<compile_context>
chip_gen: v6e
topology: v6e:2x2x1
jax: 0.10.0
libtpu: 0.0.40
codegen_flags: <defaults>
</compile_context>

<pallas_src>
import functools

import jax
import jax.numpy as jnp
from jax.experimental import pallas as pl
from jax.experimental.pallas import tpu as pltpu


def _stretch2d_kernel(x_ref, rx_ref, o_ref, *, y_scale):
    # x_ref:  (TM, W)          row tile of the flattened (b*c*h, w) input
    # rx_ref: (W, W*xs)        0/1 column-replication matrix (resident in VMEM)
    # o_ref:  (TM, ys*W*xs)    lane-packed output tile
    wo = rx_ref.shape[1]
    expanded = jnp.dot(
        x_ref[...], rx_ref[...], preferred_element_type=jnp.float32
    ).astype(o_ref.dtype)                              # (TM, W*xs), exact 1.0*x terms
    # Height replication = y_scale plain stores; the writeback DMA hides them.
    for k in range(y_scale):
        o_ref[:, k * wo:(k + 1) * wo] = expanded


def stretch2d(x, x_scale: int, y_scale: int, *, tile_rows=None):
    if not jnp.issubdtype(x.dtype, jnp.floating):
        # TODO(synk): integer inputs need a non-MXU replication path (v7x MXU is
        # float-only); only floating dtypes are supported here.
        raise TypeError(f"stretch2d kernel supports floating dtypes, got {x.dtype}")

    b, c, h, w = x.shape
    wo = w * x_scale
    rows = b * c * h
    itemsize = jnp.dtype(x.dtype).itemsize

    # Exact 0/1 nearest-neighbour width-expansion matrix: rx[k, j] = 1 iff k == j//xs.
    rx = (jax.lax.broadcasted_iota(jnp.int32, (w, wo), 0)
          == jax.lax.broadcasted_iota(jnp.int32, (w, wo), 1) // x_scale
          ).astype(x.dtype)

    x2d = x.reshape(rows, w)

    # Row-tile sizing: keep double-buffered input+output blocks inside a conservative
    # VMEM budget (leaves headroom on v7x's smaller 64 MiB VMEM), prefer the largest
    # lane-dense tile, and cap at 1024 rows so the grid stays long enough for
    # pipelining and megacore sharding.
    if tile_rows is None:
        budget = 20 * 1024 * 1024
        per_row = 2 * (w + y_scale * wo) * itemsize     # 2x = double buffering
        tm = max(8, min(1024, (budget // max(per_row, 1)) // 8 * 8))
    else:
        tm = int(tile_rows)
    if tm >= rows:
        tm = rows                                       # full extent is always legal
    grid = (pl.cdiv(rows, tm),)

    out2d = pl.pallas_call(
        functools.partial(_stretch2d_kernel, y_scale=y_scale),
        out_shape=jax.ShapeDtypeStruct((rows, y_scale * wo), x.dtype),
        grid_spec=pltpu.PrefetchScalarGridSpec(
            num_scalar_prefetch=0,
            grid=grid,
            in_specs=[
                pl.BlockSpec((tm, w), lambda i: (i, 0)),
                pl.BlockSpec((w, wo), lambda i: (0, 0)),  # constant block: fetched once
            ],
            out_specs=pl.BlockSpec((tm, y_scale * wo), lambda i: (i, 0)),
        ),
        compiler_params=pltpu.CompilerParams(
            dimension_semantics=("parallel",),
            vmem_limit_bytes=48 * 1024 * 1024,
        ),
    )(x2d, rx)

    # (b*c*h, ys*wo) is bit-identical in memory to (b, c, h*ys, w*xs): free reshape.
    return out2d.reshape(b, c, h * y_scale, wo)


if __name__ == "__main__":
    key = jax.random.PRNGKey(0)

    # Small shapes consistent with the module's forward: NCHW input.
    b, c, h, w = 2, 4, 8, 16
    x_scale, y_scale = 2, 3
    x = jax.random.normal(key, (b, c, h, w), dtype=jnp.float32)

    # Pure-JAX reference of the PyTorch semantics.
    ref = jnp.repeat(jnp.repeat(x, y_scale, axis=2), x_scale, axis=3)

    # Default (auto-sized single tile for these small shapes).
    out = jax.block_until_ready(stretch2d(x, x_scale, y_scale))
    assert out.shape == (b, c, h * y_scale, w * x_scale), out.shape
    assert out.dtype == x.dtype, out.dtype
    assert jnp.array_equal(out, ref), "mismatch vs reference (auto tile)"

    # Multi-step row-tiled path (exercises the pipelined grid).
    out_tiled = jax.block_until_ready(stretch2d(x, x_scale, y_scale, tile_rows=16))
    assert jnp.array_equal(out_tiled, ref), "mismatch vs reference (tile_rows=16)"

    # y_scale == 1 degenerate case (single full-lane store per step).
    ref_w = jnp.repeat(x, x_scale, axis=3)
    out_w = jax.block_until_ready(stretch2d(x, x_scale, 1, tile_rows=32))
    assert jnp.array_equal(out_w, ref_w), "mismatch vs reference (y_scale=1)"

    print("KERNEL_OK")
</pallas_src>

<mosaic_0001>
module attributes {stable_mosaic.version = 11 : i64} {
  func.func @_stretch2d_kernel(%arg0: i32, %arg1: memref<64x16xf32, #tpu.memory_space<vmem>>, %arg2: memref<16x32xf32, #tpu.memory_space<vmem>>, %arg3: memref<64x96xf32, #tpu.memory_space<vmem>>) attributes {dimension_semantics = [#tpu.dimension_semantics<parallel>], iteration_bounds = array<i64: 1>, scalar_prefetch = 0 : i64, scratch_operands = 0 : i64, tpu.core_type = #tpu.core_type<tc>, window_params = [{transform_indices = @transform_0, window_bounds = array<i64: 64, 16>}, {pipeline_mode = #tpu.pipeline_mode<synchronous>, transform_indices = @transform_1, window_bounds = array<i64: 16, 32>}, {transform_indices = @transform_2, window_bounds = array<i64: 64, 96>}]} {
    %c0 = arith.constant 0 : index
    %c0_0 = arith.constant 0 : index
    %0 = vector.load %arg1[%c0, %c0_0] : memref<64x16xf32, #tpu.memory_space<vmem>>, vector<64x16xf32>
    %c0_1 = arith.constant 0 : index
    %c0_2 = arith.constant 0 : index
    %1 = vector.load %arg2[%c0_1, %c0_2] : memref<16x32xf32, #tpu.memory_space<vmem>>, vector<16x32xf32>
    %cst = arith.constant dense<0.000000e+00> : vector<64x32xf32>
    %2 = tpu.matmul %0, %1, %cst {dimension_numbers = #tpu.dot_dimension_numbers<[1], [0], [0], [1], [0, 0, 1, 1], [], []>} : vector<64x16xf32>, vector<16x32xf32>, vector<64x32xf32> -> vector<64x32xf32>
    %c0_3 = arith.constant 0 : index
    %c0_4 = arith.constant 0 : index
    %3 = vector.load %arg3[%c0_3, %c0_4] : memref<64x96xf32, #tpu.memory_space<vmem>>, vector<64x32xf32>
    tpu.vector_store %arg3[%c0_3, %c0_4], %2 {strides = array<i32>} : memref<64x96xf32, #tpu.memory_space<vmem>>, vector<64x32xf32>,
    %c0_5 = arith.constant 0 : index
    %c32 = arith.constant 32 : index
    %4 = vector.load %arg3[%c0_5, %c32] : memref<64x96xf32, #tpu.memory_space<vmem>>, vector<64x32xf32>
    tpu.vector_store %arg3[%c0_5, %c32], %2 {strides = array<i32>} : memref<64x96xf32, #tpu.memory_space<vmem>>, vector<64x32xf32>,
    %c0_6 = arith.constant 0 : index
    %c64 = arith.constant 64 : index
    %5 = vector.load %arg3[%c0_6, %c64] : memref<64x96xf32, #tpu.memory_space<vmem>>, vector<64x32xf32>
    tpu.vector_store %arg3[%c0_6, %c64], %2 {strides = array<i32>} : memref<64x96xf32, #tpu.memory_space<vmem>>, vector<64x32xf32>,
    return
  }
  func.func @transform_0(%arg0: i32) -> (i32, i32) {
    %c0_i32 = arith.constant 0 : i32
    %c0_i32_0 = arith.constant 0 : i32
    return %arg0, %c0_i32 : i32, i32
  }
  func.func @transform_1(%arg0: i32) -> (i32, i32) {
    %c0_i32 = arith.constant 0 : i32
    %c0_i32_0 = arith.constant 0 : i32
    %c0_i32_1 = arith.constant 0 : i32
    return %c0_i32, %c0_i32_0 : i32, i32
  }
  func.func @transform_2(%arg0: i32) -> (i32, i32) {
    %c0_i32 = arith.constant 0 : i32
    %c0_i32_0 = arith.constant 0 : i32
    return %arg0, %c0_i32 : i32, i32
  }
}

</mosaic_0001>

<llo_original>
// kernel: tpu_custom_call.1
$region0: #{tpu_custom_call.1}
  #allocation0 [shape = 'u32[]', space=smem, size = 0x4, offset = 0x4, fixed_abs, tag = 'smem constant byte address 0x4 - core index']
  #allocation1 [shape = 'u32[144,128]{1,0:T(1,128)}', space=vmem, size = 0x12000, scoped, tag = 'internal scratch']
  %s0 = inlined_call_operand.vmem [shape: f32[64,16], index: 0, kind: input, shape index: {}]
  %s1 = inlined_call_operand.vmem [shape: f32[16,32], index: 1, kind: input, shape index: {}]
  %s2 = inlined_call_operand.hbm [shape: f32[64,96], index: 2, kind: output, shape index: {}]
  %s3 = sld [smem:[#allocation0]]
  $region18: #{tpu_custom_call.1} parent=0
    _
  %s5 = ssub.s32 1, %s3
  %s6 = scalar_select 0, %s5, %s3
  $region1: #{tpu_custom_call.1} parent=0
    #allocation2 [shape = 'u8[32768]{0}', space=vmem, size = 0x8000, scoped, tag = 'output window, operand 0, single buffered']
    #allocation3 [shape = 's32[1]{0}', space=sflag, size = 0x4, scoped, tag = 'scoped memory for tpu_custom_call.1']
    %7 = vsyncpa [#allocation3], 0
    // Predicated region
    $region2: #{tpu_custom_call.1} parent=1 // pred_check
      _
    $region3: #{tpu_custom_call.1} parent=1 // pred_check_branch
      %9 = sbr.rel (0) target = $region5
    $region4: #{tpu_custom_call.1} parent=1 // pred_region
      _
    $region5: #{tpu_custom_call.1} parent=1 // pred_fallthru
      _
    // Predicated region
    $region6: #{tpu_custom_call.1} parent=1 // pred_check
      _
    $region7: #{tpu_custom_call.1} parent=1 // pred_check_branch
      %11 = sbr.rel (0) target = $region9
    $region8: #{tpu_custom_call.1} parent=1 // pred_region
      _
    $region9: #{tpu_custom_call.1} parent=1 // pred_fallthru
      _
    %v12 = vld [vmem:[%s0] sm:$0xff]
    %v13 = vld [vmem:[%s0 + $0x8] sm:$0xff]
    %v14 = vld [vmem:[%s0 + $0x10] sm:$0xff]
    %v15 = vld [vmem:[%s0 + $0x18] sm:$0xff]
    %v16 = vld [vmem:[%s0 + $0x20] sm:$0xff]
    %v17 = vld [vmem:[%s0 + $0x28] sm:$0xff]
    %v18 = vld [vmem:[%s0 + $0x30] sm:$0xff]
    %v19 = vld [vmem:[%s0 + $0x38] sm:$0xff]
    %v20 = vld [vmem:[%s1] sm:$0xff]
    %v21 = vld [vmem:[%s1 + $0x8] sm:$0xff]
    %vm22 = vcmask 130048
    %v24 = vsel %vm22, %v12, 0
    %v27 = vsel %vm22, %v13, 0
    %v30 = vsel %vm22, %v14, 0
    %v33 = vsel %vm22, %v15, 0
    %v36 = vsel %vm22, %v16, 0
    %v39 = vsel %vm22, %v17, 0
    %v42 = vsel %vm22, %v18, 0
    %v45 = vsel %vm22, %v19, 0
    %47 = vmatprep.subr.mxu0 0.0
    %48 = vmatpush1.msra.mxu0 0.0
    %49 = vmatprep.subr.mxu0 0.0
    %50 = vmatpush1.msra.mxu0 0.0
    %51 = vmatprep.subr.mxu0 0.0
    %52 = vmatpush1.msra.mxu0 0.0
    %53 = vmatprep.subr.mxu0 0.0
    %54 = vmatpush1.msra.mxu0 0.0
    %55 = vmatprep.subr.mxu0 0.0
    %56 = vmatpush1.msra.mxu0 0.0
    %57 = vmatprep.subr.mxu0 0.0
    %58 = vmatpush1.msra.mxu0 0.0
    %59 = vmatprep.subr.mxu0 0.0
    %60 = vmatpush1.msra.mxu0 0.0
    %61 = vmatprep.subr.mxu0 0.0
    %62 = vmatpush1.msra.mxu0 0.0
    %63 = vmatprep.subr.mxu0 0.0
    %64 = vmatpush1.msra.mxu0 0.0
    %65 = vmatprep.subr.mxu0 0.0
    %66 = vmatpush1.msra.mxu0 0.0
    %67 = vmatprep.subr.mxu0 0.0
    %68 = vmatpush1.msra.mxu0 0.0
    %69 = vmatprep.subr.mxu0 0.0
    %70 = vmatpush1.msra.mxu0 0.0
    %71 = vmatprep.subr.mxu0 0.0
    %72 = vmatpush1.msra.mxu0 0.0
    %73 = vmatprep.subr.mxu0 0.0
    %74 = vmatpush1.msra.mxu0 0.0
    %75 = vmatprep.subr.mxu0 0.0
    %76 = vmatpush1.msra.mxu0 %v21
    %77 = vmatprep.subr.mxu0 0.0
    %78 = vmatpush1.msra.mxu0 %v20
    %79 = vmatprep.subr.mxu0 0.0
    %80 = vmatpush2.msra.mxu0 0.0
    %81 = vmatprep.subr.mxu0 0.0
    %82 = vmatpush2.msra.mxu0 0.0
    %83 = vmatprep.subr.mxu0 0.0
    %84 = vmatpush2.msra.mxu0 0.0
    %85 = vmatprep.subr.mxu0 0.0
    %86 = vmatpush2.msra.mxu0 0.0
    %87 = vmatprep.subr.mxu0 0.0
    %88 = vmatpush2.msra.mxu0 0.0
    %89 = vmatprep.subr.mxu0 0.0
    %90 = vmatpush2.msra.mxu0 0.0
    %91 = vmatprep.subr.mxu0 0.0
    %92 = vmatpush2.msra.mxu0 0.0
    %93 = vmatprep.subr.mxu0 0.0
    %94 = vmatpush2.msra.mxu0 0.0
    %95 = vmatprep.subr.mxu0 0.0
    %96 = vmatpush2.msra.mxu0 0.0
    %97 = vmatprep.subr.mxu0 0.0
    %98 = vmatpush2.msra.mxu0 0.0
    %99 = vmatprep.subr.mxu0 0.0
    %100 = vmatpush2.msra.mxu0 0.0
    %101 = vmatprep.subr.mxu0 0.0
    %102 = vmatpush2.msra.mxu0 0.0
    %103 = vmatprep.subr.mxu0 0.0
    %104 = vmatpush2.msra.mxu0 0.0
    %105 = vmatprep.subr.mxu0 0.0
    %106 = vmatpush2.msra.mxu0 0.0
    %107 = vmatprep.subr.mxu0 0.0
    %108 = vmatpush2.msra.mxu0 0.0
    %109 = vmatprep.subr.mxu0 0.0
    %110 = vmatpush2.msra.mxu0 0.0
    %111 = vmatprep.mubr.f32.mxu0 0.0
    %112 = vmatmul.mubr.f32.gmra.mxu0 %v24
    %v113 = vpop.f32.mrf.mxu0
    %v114 = vadd.f32 0.0, %v113
    %v115 = vpop.f32.mrf.mxu0
    %116 = vmatprep.mubr.f32.mxu0 0.0
    %117 = vmatmul.mubr.f32.gmra.mxu0 %v27
    %v118 = vpop.f32.mrf.mxu0
    %v119 = vadd.f32 0.0, %v118
    %v120 = vpop.f32.mrf.mxu0
    %121 = vmatprep.mubr.f32.mxu0 0.0
    %122 = vmatmul.mubr.f32.gmra.mxu0 %v30
    %v123 = vpop.f32.mrf.mxu0
    %v124 = vadd.f32 0.0, %v123
    %v125 = vpop.f32.mrf.mxu0
    %126 = vmatprep.mubr.f32.mxu0 0.0
    %127 = vmatmul.mubr.f32.gmra.mxu0 %v33
    %v128 = vpop.f32.mrf.mxu0
    %v129 = vadd.f32 0.0, %v128
    %v130 = vpop.f32.mrf.mxu0
    %131 = vmatprep.mubr.f32.mxu0 0.0
    %132 = vmatmul.mubr.f32.gmra.mxu0 %v36
    %v133 = vpop.f32.mrf.mxu0
    %v134 = vadd.f32 0.0, %v133
    %v135 = vpop.f32.mrf.mxu0
    %136 = vmatprep.mubr.f32.mxu0 0.0
    %137 = vmatmul.mubr.f32.gmra.mxu0 %v39
    %v138 = vpop.f32.mrf.mxu0
    %v139 = vadd.f32 0.0, %v138
    %v140 = vpop.f32.mrf.mxu0
    %141 = vmatprep.mubr.f32.mxu0 0.0
    %142 = vmatmul.mubr.f32.gmra.mxu0 %v42
    %v143 = vpop.f32.mrf.mxu0
    %v144 = vadd.f32 0.0, %v143
    %v145 = vpop.f32.mrf.mxu0
    %146 = vmatprep.mubr.f32.mxu0 0.0
    %147 = vmatmul.mubr.f32.gmra.mxu0 %v45
    %v148 = vpop.f32.mrf.mxu0
    %v149 = vadd.f32 0.0, %v148
    %v150 = vpop.f32.mrf.mxu0
    %151 = vdwg.mxu0
    %vm152 = vcmask 261120
    %153 = vst.msk [vmem:[#allocation2] sm:$0xff] %vm152, %v114
    %154 = vst.msk [vmem:[#allocation2 + $0x8] sm:$0xff] %vm152, %v119
    %155 = vst.msk [vmem:[#allocation2 + $0x10] sm:$0xff] %vm152, %v124
    %156 = vst.msk [vmem:[#allocation2 + $0x18] sm:$0xff] %vm152, %v129
    %157 = vst.msk [vmem:[#allocation2 + $0x20] sm:$0xff] %vm152, %v134
    %158 = vst.msk [vmem:[#allocation2 + $0x28] sm:$0xff] %vm152, %v139
    %159 = vst.msk [vmem:[#allocation2 + $0x30] sm:$0xff] %vm152, %v144
    %160 = vst.msk [vmem:[#allocation2 + $0x38] sm:$0xff] %vm152, %v149
    %169 = vrot.lane.b32.xlu0 %v114, 32
    %v170 = vpop.permute.xlu0 %169
    %171 = vrot.lane.b32.xlu0 %v119, 32
    %v172 = vpop.permute.xlu0 %171
    %173 = vrot.lane.b32.xlu0 %v124, 32
    %v174 = vpop.permute.xlu0 %173
    %175 = vrot.lane.b32.xlu0 %v129, 32
    %v176 = vpop.permute.xlu0 %175
    %177 = vrot.lane.b32.xlu0 %v134, 32
    %v178 = vpop.permute.xlu0 %177
    %179 = vrot.lane.b32.xlu0 %v139, 32
    %v180 = vpop.permute.xlu0 %179
    %181 = vrot.lane.b32.xlu0 %v144, 32
    %v182 = vpop.permute.xlu0 %181
    %183 = vrot.lane.b32.xlu0 %v149, 32
    %v184 = vpop.permute.xlu0 %183
    %vm193 = vcmask 523520
    %194 = vst.msk [vmem:[#allocation2] sm:$0xff] %vm193, %v170
    %195 = vst.msk [vmem:[#allocation2 + $0x8] sm:$0xff] %vm193, %v172
    %196 = vst.msk [vmem:[#allocation2 + $0x10] sm:$0xff] %vm193, %v174
    %197 = vst.msk [vmem:[#allocation2 + $0x18] sm:$0xff] %vm193, %v176
    %198 = vst.msk [vmem:[#allocation2 + $0x20] sm:$0xff] %vm193, %v178
    %199 = vst.msk [vmem:[#allocation2 + $0x28] sm:$0xff] %vm193, %v180
    %200 = vst.msk [vmem:[#allocation2 + $0x30] sm:$0xff] %vm193, %v182
    %201 = vst.msk [vmem:[#allocation2 + $0x38] sm:$0xff] %vm193, %v184
    %202 = vrot.lane.b32.xlu0 %v114, 64
    %v203 = vpop.permute.xlu0 %202
    %204 = vrot.lane.b32.xlu0 %v119, 64
    %v205 = vpop.permute.xlu0 %204
    %206 = vrot.lane.b32.xlu0 %v124, 64
    %v207 = vpop.permute.xlu0 %206
    %208 = vrot.lane.b32.xlu0 %v129, 64
    %v209 = vpop.permute.xlu0 %208
    %210 = vrot.lane.b32.xlu0 %v134, 64
    %v211 = vpop.permute.xlu0 %210
    %212 = vrot.lane.b32.xlu0 %v139, 64
    %v213 = vpop.permute.xlu0 %212
    %214 = vrot.lane.b32.xlu0 %v144, 64
    %v215 = vpop.permute.xlu0 %214
    %216 = vrot.lane.b32.xlu0 %v149, 64
    %v217 = vpop.permute.xlu0 %216
    %vm226 = vcmask 785920
    %227 = vst.msk [vmem:[#allocation2] sm:$0xff] %vm226, %v203
    %228 = vst.msk [vmem:[#allocation2 + $0x8] sm:$0xff] %vm226, %v205
    %229 = vst.msk [vmem:[#allocation2 + $0x10] sm:$0xff] %vm226, %v207
    %230 = vst.msk [vmem:[#allocation2 + $0x18] sm:$0xff] %vm226, %v209
    %231 = vst.msk [vmem:[#allocation2 + $0x20] sm:$0xff] %vm226, %v211
    %232 = vst.msk [vmem:[#allocation2 + $0x28] sm:$0xff] %vm226, %v213
    %233 = vst.msk [vmem:[#allocation2 + $0x30] sm:$0xff] %vm226, %v215
    %234 = vst.msk [vmem:[#allocation2 + $0x38] sm:$0xff] %vm226, %v217
    // Predicated region
    $region10: #{tpu_custom_call.1} parent=1 // pred_check
      _
    $region11: #{tpu_custom_call.1} parent=1 // pred_check_branch
      %236 = sbr.rel (0) target = $region13
    $region12: #{tpu_custom_call.1} parent=1 // pred_region
      %s238 = ssub.s32 1024, 1024
      %239 = vsyncadd [#allocation3], %s238
      %s240 = sshll.u32 [#allocation2], 4
      %s241 = int_to_ptr.vmem [resolvable:$true] %s240
      %246 = dma.vmem_to_hbm [thread:$0]  %s241, 1024, %s2, [#allocation3], 128, 128, 8
    $region13: #{tpu_custom_call.1} parent=1 // pred_fallthru
      _
    // Predicated region
    $region14: #{tpu_custom_call.1} parent=1 // pred_check
      _
    $region15: #{tpu_custom_call.1} parent=1 // pred_check_branch
      %248 = sbr.rel (0) target = $region17
    $region16: #{tpu_custom_call.1} parent=1 // pred_region
      %249 = dma.done [#allocation3], 1024
    $region17: #{tpu_custom_call.1} parent=1 // pred_fallthru
      _
    %250 = vsyncpa [#allocation3], 1

</llo_original>
